<compile_context>
chip_gen: v5e
topology: v5e:2x2
jax: 0.10.0
libtpu: 0.0.40
codegen_flags: <defaults>
</compile_context>

<pallas_src>
import functools
import math

import jax
import jax.numpy as jnp
from jax.experimental import pallas as pl
from jax.experimental.pallas import tpu as pltpu


def _round_up(v, m):
    return (v + m - 1) // m * m


# --------------------------- call 1: edge stage ------------------------------
def _edge_stage_kernel(seq_ref, x_ref, w1_ref, w2_ref, w3_ref, e1_ref,
                       xw_scr, edge_scr, *, e_rows, k, n_rows):
    """inter_nw + x@W1, hyperedge gather + relu, @W2  ->  e1 (E_pad, 128)."""
    # ---- cosine-similarity scalar (inter_nw): f32 on VPU/XLU/EUP ------------
    w3 = w3_ref[...]                                               # (TV, TV)
    tv = w3[0:1, :]                                                # (1, TV)
    dot = jnp.sum(w3 * tv, axis=1, keepdims=True)                  # (TV, 1)
    norm_vec = jnp.sqrt(jnp.sum(tv * tv))                          # scalar
    norm_rows = jnp.sqrt(jnp.sum(w3 * w3, axis=1, keepdims=True))  # (TV, 1)
    cos = dot / (norm_vec * norm_rows)   # no epsilon: matches the reference
    inter_nw = jnp.sum(cos) / jnp.float32(w3.shape[0])             # scalar

    # ---- x @ (W1 * inter_nw): scalar folded into the small weight -----------
    w1s = (w1_ref[...] * inter_nw).astype(jnp.bfloat16)
    xw_scr[...] = jnp.dot(x_ref[...].astype(jnp.bfloat16), w1s,
                          preferred_element_type=jnp.float32)      # (N_pad, OUT)

    # ---- hyperedge aggregation: SMEM index gather + f32 VPU weighted sum ----
    inv_k = jnp.float32(1.0 / k)

    @pl.loop(0, e_rows)
    def _(e):
        base = e * k
        idxs = [seq_ref[base + j] for j in range(k)]               # SMEM scalars
        cnt = jnp.float32(0.0)
        for idx in idxs:
            cnt = cnt + (idx > 0).astype(jnp.float32)
        has = cnt > 0.0
        # Exact closed form of softmax(where(idx > 0, 1, -9e15), axis=1):
        #   mask / count, or uniform 1/K when the row is all padding.
        inv = jnp.where(has, 1.0 / jnp.maximum(cnt, 1.0), inv_k)
        acc = jnp.zeros((1, xw_scr.shape[1]), jnp.float32)
        for idx in idxs:
            w = jnp.where(has, (idx > 0).astype(jnp.float32),
                          jnp.float32(1.0)) * inv
            safe = jnp.clip(idx, 0, n_rows - 1)  # guard silent OOB VMEM reads
            acc = acc + w * xw_scr[pl.ds(safe, 1), :]
        # F.dropout -> identity (eval mode); relu.
        edge_scr[pl.ds(e, 1), :] = jnp.maximum(acc, jnp.float32(0.0))

    # ---- edge @ W2 (bf16 MXU, f32 acc); W2 columns zero-padded to 128 -------
    e1_ref[...] = jnp.dot(edge_scr[...].astype(jnp.bfloat16),
                          w2_ref[...].astype(jnp.bfloat16),
                          preferred_element_type=jnp.float32)      # (E_pad, 128)


# --------------------------- call 2: node stage ------------------------------
def _node_stage_kernel(useq_ref, e1_ref, out_ref, *, tm, k2, e_rows):
    """Per-node gather of e1 rows for one tile of `tm` output rows."""
    m0 = pl.program_id(0) * tm
    inv_k = jnp.float32(1.0 / k2)

    @pl.loop(0, tm)
    def _(r):
        base = (m0 + r) * k2
        idxs = [useq_ref[base + j] for j in range(k2)]             # SMEM scalars
        cnt = jnp.float32(0.0)
        for idx in idxs:
            cnt = cnt + (idx > 0).astype(jnp.float32)
        has = cnt > 0.0
        inv = jnp.where(has, 1.0 / jnp.maximum(cnt, 1.0), inv_k)
        acc = jnp.zeros((1, e1_ref.shape[1]), jnp.float32)
        for idx in idxs:
            w = jnp.where(has, (idx > 0).astype(jnp.float32),
                          jnp.float32(1.0)) * inv
            safe = jnp.clip(idx, 0, e_rows - 1)  # guard silent OOB VMEM reads
            acc = acc + w * e1_ref[pl.ds(safe, 1), :]
        # final F.dropout -> identity (eval mode)
        out_ref[pl.ds(r, 1), :] = acc


# ------------------------------- wrapper --------------------------------------
def hgnn_layer_forward(params, x, seq, useq_idx, *, tm=128):
    """Full HGNN_layer eval-mode forward: edge stage + tiled node stage."""
    w1, w2, w3 = params
    x = x.astype(jnp.float32)
    seq = seq.astype(jnp.int32)
    useq_idx = useq_idx.astype(jnp.int32)
    w1 = w1.astype(jnp.float32)
    w2 = w2.astype(jnp.float32)
    w3 = w3.astype(jnp.float32)

    N, IN = x.shape
    E, K = seq.shape
    M, K2 = useq_idx.shape
    OUT = w1.shape[1]
    TV = w3.shape[0]

    # Sublane-align row counts; lane-pad only W2's columns / e1 / node to 128
    # so the HBM stores are lane-dense while xw/edge stay at the true OUT width.
    n_pad = _round_up(N, 8)
    e_pad = _round_up(E, 8)
    out_lanes = _round_up(OUT, 128)
    m8 = _round_up(M, 8)
    tm = _round_up(min(tm, m8), 8)
    m_pad = _round_up(m8, tm)

    x_p = jnp.zeros((n_pad, IN), jnp.float32).at[:N, :].set(x)
    w2_p = jnp.zeros((OUT, out_lanes), jnp.float32).at[:, :OUT].set(w2)
    # Index tensors flattened to 1-D int32 for SMEM (avoids 2-D SMEM padding).
    # Invariant: seq values in [0, N), useq values in [0, E); 0 == padding id.
    seq_flat = jnp.zeros((e_pad * K,), jnp.int32).at[:E * K].set(seq.reshape(-1))
    useq_flat = jnp.zeros((m_pad * K2,), jnp.int32).at[:M * K2].set(
        useq_idx.reshape(-1))

    # ---- call 1: edge stage (grid-invariant work, computed once) ------------
    edge_kernel = functools.partial(_edge_stage_kernel,
                                    e_rows=e_pad, k=K, n_rows=n_pad)
    e1 = pl.pallas_call(
        edge_kernel,
        out_shape=jax.ShapeDtypeStruct((e_pad, out_lanes), jnp.float32),
        grid_spec=pltpu.PrefetchScalarGridSpec(
            num_scalar_prefetch=1,
            grid=(1,),
            in_specs=[
                pl.BlockSpec((n_pad, IN), lambda i, s: (0, 0)),        # x
                pl.BlockSpec((IN, OUT), lambda i, s: (0, 0)),          # W1
                pl.BlockSpec((OUT, out_lanes), lambda i, s: (0, 0)),   # W2 (col-pad)
                pl.BlockSpec((TV, TV), lambda i, s: (0, 0)),           # W3
            ],
            out_specs=pl.BlockSpec((e_pad, out_lanes), lambda i, s: (0, 0)),
            scratch_shapes=[
                pltpu.VMEM((n_pad, OUT), jnp.float32),   # xw = x @ W1
                pltpu.VMEM((e_pad, OUT), jnp.float32),   # relu(edge)
            ],
        ),
        compiler_params=pltpu.CompilerParams(
            dimension_semantics=("arbitrary",)),
    )(seq_flat, x_p, w1, w2_p, w3)

    # ---- call 2: node stage, tiled over output rows ("parallel") ------------
    node_kernel = functools.partial(_node_stage_kernel,
                                    tm=tm, k2=K2, e_rows=e_pad)
    node = pl.pallas_call(
        node_kernel,
        out_shape=jax.ShapeDtypeStruct((m_pad, out_lanes), jnp.float32),
        grid_spec=pltpu.PrefetchScalarGridSpec(
            num_scalar_prefetch=1,
            grid=(m_pad // tm,),
            in_specs=[
                pl.BlockSpec((e_pad, out_lanes), lambda i, u: (0, 0)),  # e1 (full)
            ],
            out_specs=pl.BlockSpec((tm, out_lanes), lambda i, u: (i, 0)),
        ),
        compiler_params=pltpu.CompilerParams(
            dimension_semantics=("parallel",)),
    )(useq_flat, e1)

    return node[:M, :OUT]


def hgnn_forward(params, x, seq, TextVector, useq):
    # HGNN.forward wiring: the layer's index tensor is HGNN's `TextVector`
    # slot; HGNN's `useq` slot is unused (layer overwrites it with weight3[0]).
    del useq
    return hgnn_layer_forward(params, x, seq, useq_idx=TextVector)


# ---------------------------- pure-JAX reference -----------------------------
def hgnn_ref(params, x, seq, useq_idx):
    w1, w2, w3 = params
    tv = w3[0]
    dot = w3 @ tv
    cos = dot / (jnp.linalg.norm(tv) * jnp.linalg.norm(w3, axis=1))
    inter_nw = jnp.mean(cos)
    xw = (x @ w1) * inter_nw
    p = jax.nn.softmax(jnp.where(seq > 0, 1.0, -9.0e15), axis=1)
    edge = jnp.einsum('abc,ab->ac', xw[seq], p)
    edge = jax.nn.relu(edge)
    e1 = edge @ w2
    up = jax.nn.softmax(jnp.where(useq_idx > 0, 1.0, -9.0e15), axis=1)
    node = jnp.einsum('abc,ab->ac', e1[useq_idx], up)
    return node


if __name__ == "__main__":
    IN, OUT, TV = 32, 32, 16     # input_size, output_size, TextVector_size
    N, E, K = 16, 12, 8          # nodes, hyperedges, nodes-per-edge
    M, K2 = 10, 8                # aggregated nodes, edges-per-node

    key = jax.random.PRNGKey(0)
    k1, k2, k3, kx, ks, ku, kd = jax.random.split(key, 7)

    # uniform(-stdv, stdv) init, stdv = 1/sqrt(in_features) (as in the module)
    stdv = 1.0 / math.sqrt(IN)
    w1 = jax.random.uniform(k1, (IN, OUT), jnp.float32, -stdv, stdv)
    w2 = jax.random.uniform(k2, (OUT, OUT), jnp.float32, -stdv, stdv)
    w3 = jax.random.uniform(k3, (TV, TV), jnp.float32, -stdv, stdv)
    params = (w1, w2, w3)

    x = jax.random.normal(kx, (N, IN), jnp.float32)
    seq = jax.random.randint(ks, (E, K), 0, N, jnp.int32)        # 0 = padding
    useq_idx = jax.random.randint(ku, (M, K2), 0, E, jnp.int32)  # 0 = padding
    dummy_unused = jax.random.normal(kd, (TV,), jnp.float32)     # HGNN's `useq` slot

    node = hgnn_forward(params, x, seq, useq_idx, dummy_unused)
    node = jax.block_until_ready(node)

    ref = hgnn_ref(params, x, seq, useq_idx)
    assert node.shape == (M, OUT) and node.dtype == jnp.float32
    # bf16 MXU operands for x@W1 and edge@W2 -> relaxed tolerance vs f32 ref.
    assert jnp.allclose(node, ref, rtol=2e-2, atol=2e-2), "mismatch vs reference"
    print("KERNEL_OK")
</pallas_src>

<mosaic_0001>
module attributes {stable_mosaic.version = 11 : i64} {
  func.func @_edge_stage_kernel(%arg0: i32, %arg1: memref<128xi32, #tpu.memory_space<smem>>, %arg2: memref<16x32xf32, #tpu.memory_space<vmem>>, %arg3: memref<32x32xf32, #tpu.memory_space<vmem>>, %arg4: memref<32x128xf32, #tpu.memory_space<vmem>>, %arg5: memref<16x16xf32, #tpu.memory_space<vmem>>, %arg6: memref<16x128xf32, #tpu.memory_space<vmem>>, %arg7: memref<16x32xf32, #tpu.memory_space<vmem>>, %arg8: memref<16x32xf32, #tpu.memory_space<vmem>>) attributes {dimension_semantics = [#tpu.dimension_semantics<arbitrary>], iteration_bounds = array<i64: 1>, scalar_prefetch = 1 : i64, scratch_operands = 2 : i64, tpu.core_type = #tpu.core_type<tc>, window_params = [{pipeline_mode = #tpu.pipeline_mode<synchronous>, transform_indices = @transform_0, window_bounds = array<i64: 16, 32>}, {pipeline_mode = #tpu.pipeline_mode<synchronous>, transform_indices = @transform_1, window_bounds = array<i64: 32, 32>}, {pipeline_mode = #tpu.pipeline_mode<synchronous>, transform_indices = @transform_2, window_bounds = array<i64: 32, 128>}, {pipeline_mode = #tpu.pipeline_mode<synchronous>, transform_indices = @transform_3, window_bounds = array<i64: 16, 16>}, {pipeline_mode = #tpu.pipeline_mode<synchronous>, transform_indices = @transform_4, window_bounds = array<i64: 16, 128>}]} {
    %c0 = arith.constant 0 : index
    %c0_0 = arith.constant 0 : index
    %0 = vector.load %arg5[%c0, %c0_0] : memref<16x16xf32, #tpu.memory_space<vmem>>, vector<16x16xf32>
    %1 = vector.extract_strided_slice %0 {offsets = [0, 0], sizes = [1, 16], strides = [1, 1]} : vector<16x16xf32> to vector<1x16xf32>
    %2 = vector.broadcast %1 : vector<1x16xf32> to vector<16x16xf32>
    %3 = arith.mulf %0, %2 : vector<16x16xf32>
    %cst = arith.constant dense<0.000000e+00> : vector<16xf32>
    %4 = vector.multi_reduction <add>, %3, %cst [1] : vector<16x16xf32> to vector<16xf32>
    %5 = vector.shape_cast %4 : vector<16xf32> to vector<16x1xf32>
    %6 = arith.mulf %1, %1 : vector<1x16xf32>
    %7 = vector.shape_cast %6 : vector<1x16xf32> to vector<1x1x16xf32>
    %cst_1 = arith.constant dense<0.000000e+00> : vector<1xf32>
    %8 = vector.multi_reduction <add>, %7, %cst_1 [1, 2] : vector<1x1x16xf32> to vector<1xf32>
    %9 = vector.shape_cast %8 : vector<1xf32> to vector<1x1x1xf32>
    %10 = vector.extract %9[0, 0, 0] : f32 from vector<1x1x1xf32>
    %11 = math.sqrt %10 : f32
    %12 = arith.mulf %0, %0 : vector<16x16xf32>
    %cst_2 = arith.constant dense<0.000000e+00> : vector<16xf32>
    %13 = vector.multi_reduction <add>, %12, %cst_2 [1] : vector<16x16xf32> to vector<16xf32>
    %14 = vector.shape_cast %13 : vector<16xf32> to vector<16x1xf32>
    %15 = math.sqrt %14 : vector<16x1xf32>
    %16 = vector.broadcast %11 : f32 to vector<16x1xf32>
    %17 = arith.mulf %16, %15 : vector<16x1xf32>
    %18 = arith.divf %5, %17 : vector<16x1xf32>
    %19 = vector.shape_cast %18 : vector<16x1xf32> to vector<1x16x1xf32>
    %cst_3 = arith.constant dense<0.000000e+00> : vector<1xf32>
    %20 = vector.multi_reduction <add>, %19, %cst_3 [1, 2] : vector<1x16x1xf32> to vector<1xf32>
    %21 = vector.shape_cast %20 : vector<1xf32> to vector<1x1x1xf32>
    %22 = vector.extract %21[0, 0, 0] : f32 from vector<1x1x1xf32>
    %cst_4 = arith.constant 1.600000e+01 : f32
    %23 = arith.divf %22, %cst_4 : f32
    %c0_5 = arith.constant 0 : index
    %c0_6 = arith.constant 0 : index
    %24 = vector.load %arg3[%c0_5, %c0_6] : memref<32x32xf32, #tpu.memory_space<vmem>>, vector<32x32xf32>
    %25 = vector.broadcast %23 : f32 to vector<32x32xf32>
    %26 = arith.mulf %24, %25 : vector<32x32xf32>
    %27 = arith.truncf %26 : vector<32x32xf32> to vector<32x32xbf16>
    %c0_7 = arith.constant 0 : index
    %c0_8 = arith.constant 0 : index
    %28 = vector.load %arg2[%c0_7, %c0_8] : memref<16x32xf32, #tpu.memory_space<vmem>>, vector<16x32xf32>
    %29 = arith.truncf %28 : vector<16x32xf32> to vector<16x32xbf16>
    %cst_9 = arith.constant dense<0.000000e+00> : vector<16x32xf32>
    %30 = tpu.matmul %29, %27, %cst_9 {dimension_numbers = #tpu.dot_dimension_numbers<[1], [0], [0], [1], [0, 0, 1, 1], [], []>} : vector<16x32xbf16>, vector<32x32xbf16>, vector<16x32xf32> -> vector<16x32xf32>
    %c0_10 = arith.constant 0 : index
    %c0_11 = arith.constant 0 : index
    %31 = vector.load %arg7[%c0_10, %c0_11] : memref<16x32xf32, #tpu.memory_space<vmem>>, vector<16x32xf32>
    tpu.vector_store %arg7[%c0_10, %c0_11], %30 {strides = array<i32>} : memref<16x32xf32, #tpu.memory_space<vmem>>, vector<16x32xf32>,
    %cst_12 = arith.constant 1.250000e-01 : f32
    %c0_i32 = arith.constant 0 : i32
    %c16_i32 = arith.constant 16 : i32
    %32 = arith.addi %c0_i32, %c16_i32 : i32
    %c1_i32 = arith.constant 1 : i32
    scf.for %arg9 = %c0_i32 to %32 step %c1_i32  : i32 {
      %c1_i32_21 = arith.constant 1 : i32
      %39 = arith.muli %arg9, %c1_i32_21 : i32
      %c0_i32_22 = arith.constant 0 : i32
      %40 = arith.addi %c0_i32_22, %39 : i32
      %c8_i32 = arith.constant 8 : i32
      %41 = arith.muli %40, %c8_i32 : i32
      %c0_i32_23 = arith.constant 0 : i32
      %42 = arith.addi %41, %c0_i32_23 : i32
      %43 = arith.index_cast %42 : i32 to index
      %44 = memref.load %arg1[%43] : memref<128xi32, #tpu.memory_space<smem>>
      %c1_i32_24 = arith.constant 1 : i32
      %45 = arith.addi %41, %c1_i32_24 : i32
      %46 = arith.index_cast %45 : i32 to index
      %47 = memref.load %arg1[%46] : memref<128xi32, #tpu.memory_space<smem>>
      %c2_i32 = arith.constant 2 : i32
      %48 = arith.addi %41, %c2_i32 : i32
      %49 = arith.index_cast %48 : i32 to index
      %50 = memref.load %arg1[%49] : memref<128xi32, #tpu.memory_space<smem>>
      %c3_i32 = arith.constant 3 : i32
      %51 = arith.addi %41, %c3_i32 : i32
      %52 = arith.index_cast %51 : i32 to index
      %53 = memref.load %arg1[%52] : memref<128xi32, #tpu.memory_space<smem>>
      %c4_i32 = arith.constant 4 : i32
      %54 = arith.addi %41, %c4_i32 : i32
      %55 = arith.index_cast %54 : i32 to index
      %56 = memref.load %arg1[%55] : memref<128xi32, #tpu.memory_space<smem>>
      %c5_i32 = arith.constant 5 : i32
      %57 = arith.addi %41, %c5_i32 : i32
      %58 = arith.index_cast %57 : i32 to index
      %59 = memref.load %arg1[%58] : memref<128xi32, #tpu.memory_space<smem>>
      %c6_i32 = arith.constant 6 : i32
      %60 = arith.addi %41, %c6_i32 : i32
      %61 = arith.index_cast %60 : i32 to index
      %62 = memref.load %arg1[%61] : memref<128xi32, #tpu.memory_space<smem>>
      %c7_i32 = arith.constant 7 : i32
      %63 = arith.addi %41, %c7_i32 : i32
      %64 = arith.index_cast %63 : i32 to index
      %65 = memref.load %arg1[%64] : memref<128xi32, #tpu.memory_space<smem>>
      %c0_i32_25 = arith.constant 0 : i32
      %66 = arith.cmpi sgt, %44, %c0_i32_25 : i32
      %67 = arith.extui %66 : i1 to i32
      %68 = arith.sitofp %67 : i32 to f32
      %cst_26 = arith.constant 0.000000e+00 : f32
      %69 = arith.addf %cst_26, %68 : f32
      %c0_i32_27 = arith.constant 0 : i32
      %70 = arith.cmpi sgt, %47, %c0_i32_27 : i32
      %71 = arith.extui %70 : i1 to i32
      %72 = arith.sitofp %71 : i32 to f32
      %73 = arith.addf %69, %72 : f32
      %c0_i32_28 = arith.constant 0 : i32
      %74 = arith.cmpi sgt, %50, %c0_i32_28 : i32
      %75 = arith.extui %74 : i1 to i32
      %76 = arith.sitofp %75 : i32 to f32
      %77 = arith.addf %73, %76 : f32
      %c0_i32_29 = arith.constant 0 : i32
      %78 = arith.cmpi sgt, %53, %c0_i32_29 : i32
      %79 = arith.extui %78 : i1 to i32
      %80 = arith.sitofp %79 : i32 to f32
      %81 = arith.addf %77, %80 : f32
      %c0_i32_30 = arith.constant 0 : i32
      %82 = arith.cmpi sgt, %56, %c0_i32_30 : i32
      %83 = arith.extui %82 : i1 to i32
      %84 = arith.sitofp %83 : i32 to f32
      %85 = arith.addf %81, %84 : f32
      %c0_i32_31 = arith.constant 0 : i32
      %86 = arith.cmpi sgt, %59, %c0_i32_31 : i32
      %87 = arith.extui %86 : i1 to i32
      %88 = arith.sitofp %87 : i32 to f32
      %89 = arith.addf %85, %88 : f32
      %c0_i32_32 = arith.constant 0 : i32
      %90 = arith.cmpi sgt, %62, %c0_i32_32 : i32
      %91 = arith.extui %90 : i1 to i32
      %92 = arith.sitofp %91 : i32 to f32
      %93 = arith.addf %89, %92 : f32
      %c0_i32_33 = arith.constant 0 : i32
      %94 = arith.cmpi sgt, %65, %c0_i32_33 : i32
      %95 = arith.extui %94 : i1 to i32
      %96 = arith.sitofp %95 : i32 to f32
      %97 = arith.addf %93, %96 : f32
      %cst_34 = arith.constant 0.000000e+00 : f32
      %98 = arith.cmpf ogt, %97, %cst_34 : f32
      %cst_35 = arith.constant 1.000000e+00 : f32
      %99 = arith.maximumf %97, %cst_35 : f32
      %cst_36 = arith.constant 1.000000e+00 : f32
      %100 = arith.divf %cst_36, %99 : f32
      %101 = arith.select %98, %100, %cst_12 : f32
      %cst_37 = arith.constant 0.000000e+00 : f32
      %102 = vector.broadcast %cst_37 : f32 to vector<1x32xf32>
      %c0_i32_38 = arith.constant 0 : i32
      %103 = arith.cmpi sgt, %44, %c0_i32_38 : i32
      %104 = arith.extui %103 : i1 to i32
      %105 = arith.sitofp %104 : i32 to f32
      %cst_39 = arith.constant 1.000000e+00 : f32
      %106 = arith.select %98, %105, %cst_39 : f32
      %107 = arith.mulf %106, %101 : f32
      %c0_i32_40 = arith.constant 0 : i32
      %c15_i32 = arith.constant 15 : i32
      %108 = arith.maxsi %c0_i32_40, %44 : i32
      %109 = arith.minsi %c15_i32, %108 : i32
      %110 = arith.index_cast %109 : i32 to index
      %c0_41 = arith.constant 0 : index
      %111 = vector.load %arg7[%110, %c0_41] : memref<16x32xf32, #tpu.memory_space<vmem>>, vector<1x32xf32>
      %112 = vector.broadcast %107 : f32 to vector<1x32xf32>
      %113 = arith.mulf %112, %111 : vector<1x32xf32>
      %114 = arith.addf %102, %113 : vector<1x32xf32>
      %c0_i32_42 = arith.constant 0 : i32
      %115 = arith.cmpi sgt, %47, %c0_i32_42 : i32
      %116 = arith.extui %115 : i1 to i32
      %117 = arith.sitofp %116 : i32 to f32
      %cst_43 = arith.constant 1.000000e+00 : f32
      %118 = arith.select %98, %117, %cst_43 : f32
      %119 = arith.mulf %118, %101 : f32
      %c0_i32_44 = arith.constant 0 : i32
      %c15_i32_45 = arith.constant 15 : i32
      %120 = arith.maxsi %c0_i32_44, %47 : i32
      %121 = arith.minsi %c15_i32_45, %120 : i32
      %122 = arith.index_cast %121 : i32 to index
      %c0_46 = arith.constant 0 : index
      %123 = vector.load %arg7[%122, %c0_46] : memref<16x32xf32, #tpu.memory_space<vmem>>, vector<1x32xf32>
      %124 = vector.broadcast %119 : f32 to vector<1x32xf32>
      %125 = arith.mulf %124, %123 : vector<1x32xf32>
      %126 = arith.addf %114, %125 : vector<1x32xf32>
      %c0_i32_47 = arith.constant 0 : i32
      %127 = arith.cmpi sgt, %50, %c0_i32_47 : i32
      %128 = arith.extui %127 : i1 to i32
      %129 = arith.sitofp %128 : i32 to f32
      %cst_48 = arith.constant 1.000000e+00 : f32
      %130 = arith.select %98, %129, %cst_48 : f32
      %131 = arith.mulf %130, %101 : f32
      %c0_i32_49 = arith.constant 0 : i32
      %c15_i32_50 = arith.constant 15 : i32
      %132 = arith.maxsi %c0_i32_49, %50 : i32
      %133 = arith.minsi %c15_i32_50, %132 : i32
      %134 = arith.index_cast %133 : i32 to index
      %c0_51 = arith.constant 0 : index
      %135 = vector.load %arg7[%134, %c0_51] : memref<16x32xf32, #tpu.memory_space<vmem>>, vector<1x32xf32>
      %136 = vector.broadcast %131 : f32 to vector<1x32xf32>
      %137 = arith.mulf %136, %135 : vector<1x32xf32>
      %138 = arith.addf %126, %137 : vector<1x32xf32>
      %c0_i32_52 = arith.constant 0 : i32
      %139 = arith.cmpi sgt, %53, %c0_i32_52 : i32
      %140 = arith.extui %139 : i1 to i32
      %141 = arith.sitofp %140 : i32 to f32
      %cst_53 = arith.constant 1.000000e+00 : f32
      %142 = arith.select %98, %141, %cst_53 : f32
      %143 = arith.mulf %142, %101 : f32
      %c0_i32_54 = arith.constant 0 : i32
      %c15_i32_55 = arith.constant 15 : i32
      %144 = arith.maxsi %c0_i32_54, %53 : i32
      %145 = arith.minsi %c15_i32_55, %144 : i32
      %146 = arith.index_cast %145 : i32 to index
      %c0_56 = arith.constant 0 : index
      %147 = vector.load %arg7[%146, %c0_56] : memref<16x32xf32, #tpu.memory_space<vmem>>, vector<1x32xf32>
      %148 = vector.broadcast %143 : f32 to vector<1x32xf32>
      %149 = arith.mulf %148, %147 : vector<1x32xf32>
      %150 = arith.addf %138, %149 : vector<1x32xf32>
      %c0_i32_57 = arith.constant 0 : i32
      %151 = arith.cmpi sgt, %56, %c0_i32_57 : i32
      %152 = arith.extui %151 : i1 to i32
      %153 = arith.sitofp %152 : i32 to f32
      %cst_58 = arith.constant 1.000000e+00 : f32
      %154 = arith.select %98, %153, %cst_58 : f32
      %155 = arith.mulf %154, %101 : f32
      %c0_i32_59 = arith.constant 0 : i32
      %c15_i32_60 = arith.constant 15 : i32
      %156 = arith.maxsi %c0_i32_59, %56 : i32
      %157 = arith.minsi %c15_i32_60, %156 : i32
      %158 = arith.index_cast %157 : i32 to index
      %c0_61 = arith.constant 0 : index
      %159 = vector.load %arg7[%158, %c0_61] : memref<16x32xf32, #tpu.memory_space<vmem>>, vector<1x32xf32>
      %160 = vector.broadcast %155 : f32 to vector<1x32xf32>
      %161 = arith.mulf %160, %159 : vector<1x32xf32>
      %162 = arith.addf %150, %161 : vector<1x32xf32>
      %c0_i32_62 = arith.constant 0 : i32
      %163 = arith.cmpi sgt, %59, %c0_i32_62 : i32
      %164 = arith.extui %163 : i1 to i32
      %165 = arith.sitofp %164 : i32 to f32
      %cst_63 = arith.constant 1.000000e+00 : f32
      %166 = arith.select %98, %165, %cst_63 : f32
      %167 = arith.mulf %166, %101 : f32
      %c0_i32_64 = arith.constant 0 : i32
      %c15_i32_65 = arith.constant 15 : i32
      %168 = arith.maxsi %c0_i32_64, %59 : i32
      %169 = arith.minsi %c15_i32_65, %168 : i32
      %170 = arith.index_cast %169 : i32 to index
      %c0_66 = arith.constant 0 : index
      %171 = vector.load %arg7[%170, %c0_66] : memref<16x32xf32, #tpu.memory_space<vmem>>, vector<1x32xf32>
      %172 = vector.broadcast %167 : f32 to vector<1x32xf32>
      %173 = arith.mulf %172, %171 : vector<1x32xf32>
      %174 = arith.addf %162, %173 : vector<1x32xf32>
      %c0_i32_67 = arith.constant 0 : i32
      %175 = arith.cmpi sgt, %62, %c0_i32_67 : i32
      %176 = arith.extui %175 : i1 to i32
      %177 = arith.sitofp %176 : i32 to f32
      %cst_68 = arith.constant 1.000000e+00 : f32
      %178 = arith.select %98, %177, %cst_68 : f32
      %179 = arith.mulf %178, %101 : f32
      %c0_i32_69 = arith.constant 0 : i32
      %c15_i32_70 = arith.constant 15 : i32
      %180 = arith.maxsi %c0_i32_69, %62 : i32
      %181 = arith.minsi %c15_i32_70, %180 : i32
      %182 = arith.index_cast %181 : i32 to index
      %c0_71 = arith.constant 0 : index
      %183 = vector.load %arg7[%182, %c0_71] : memref<16x32xf32, #tpu.memory_space<vmem>>, vector<1x32xf32>
      %184 = vector.broadcast %179 : f32 to vector<1x32xf32>
      %185 = arith.mulf %184, %183 : vector<1x32xf32>
      %186 = arith.addf %174, %185 : vector<1x32xf32>
      %c0_i32_72 = arith.constant 0 : i32
      %187 = arith.cmpi sgt, %65, %c0_i32_72 : i32
      %188 = arith.extui %187 : i1 to i32
      %189 = arith.sitofp %188 : i32 to f32
      %cst_73 = arith.constant 1.000000e+00 : f32
      %190 = arith.select %98, %189, %cst_73 : f32
      %191 = arith.mulf %190, %101 : f32
      %c0_i32_74 = arith.constant 0 : i32
      %c15_i32_75 = arith.constant 15 : i32
      %192 = arith.maxsi %c0_i32_74, %65 : i32
      %193 = arith.minsi %c15_i32_75, %192 : i32
      %194 = arith.index_cast %193 : i32 to index
      %c0_76 = arith.constant 0 : index
      %195 = vector.load %arg7[%194, %c0_76] : memref<16x32xf32, #tpu.memory_space<vmem>>, vector<1x32xf32>
      %196 = vector.broadcast %191 : f32 to vector<1x32xf32>
      %197 = arith.mulf %196, %195 : vector<1x32xf32>
      %198 = arith.addf %186, %197 : vector<1x32xf32>
      %cst_77 = arith.constant 0.000000e+00 : f32
      %199 = vector.broadcast %cst_77 : f32 to vector<1x32xf32>
      %200 = arith.maximumf %198, %199 : vector<1x32xf32>
      %201 = arith.index_cast %40 : i32 to index
      %c0_78 = arith.constant 0 : index
      %202 = vector.load %arg8[%201, %c0_78] : memref<16x32xf32, #tpu.memory_space<vmem>>, vector<1x32xf32>
      tpu.vector_store %arg8[%201, %c0_78], %200 {strides = array<i32>} : memref<16x32xf32, #tpu.memory_space<vmem>>, vector<1x32xf32>,
    }
    %c16_i32_13 = arith.constant 16 : i32
    %c0_14 = arith.constant 0 : index
    %c0_15 = arith.constant 0 : index
    %33 = vector.load %arg8[%c0_14, %c0_15] : memref<16x32xf32, #tpu.memory_space<vmem>>, vector<16x32xf32>
    %34 = arith.truncf %33 : vector<16x32xf32> to vector<16x32xbf16>
    %c0_16 = arith.constant 0 : index
    %c0_17 = arith.constant 0 : index
    %35 = vector.load %arg4[%c0_16, %c0_17] : memref<32x128xf32, #tpu.memory_space<vmem>>, vector<32x128xf32>
    %36 = arith.truncf %35 : vector<32x128xf32> to vector<32x128xbf16>
    %cst_18 = arith.constant dense<0.000000e+00> : vector<16x128xf32>
    %37 = tpu.matmul %34, %36, %cst_18 {dimension_numbers = #tpu.dot_dimension_numbers<[1], [0], [0], [1], [0, 0, 1, 1], [], []>} : vector<16x32xbf16>, vector<32x128xbf16>, vector<16x128xf32> -> vector<16x128xf32>
    %c0_19 = arith.constant 0 : index
    %c0_20 = arith.constant 0 : index
    %38 = vector.load %arg6[%c0_19, %c0_20] : memref<16x128xf32, #tpu.memory_space<vmem>>, vector<16x128xf32>
    tpu.vector_store %arg6[%c0_19, %c0_20], %37 {strides = array<i32>} : memref<16x128xf32, #tpu.memory_space<vmem>>, vector<16x128xf32>,
    return
  }
  func.func @transform_0(%arg0: i32, %arg1: memref<128xi32, #tpu.memory_space<smem>>) -> (i32, i32) {
    %c0_i32 = arith.constant 0 : i32
    %c0_i32_0 = arith.constant 0 : i32
    %c0_i32_1 = arith.constant 0 : i32
    return %c0_i32, %c0_i32_0 : i32, i32
  }
  func.func @transform_1(%arg0: i32, %arg1: memref<128xi32, #tpu.memory_space<smem>>) -> (i32, i32) {
    %c0_i32 = arith.constant 0 : i32
    %c0_i32_0 = arith.constant 0 : i32
    %c0_i32_1 = arith.constant 0 : i32
    return %c0_i32, %c0_i32_0 : i32, i32
  }
  func.func @transform_2(%arg0: i32, %arg1: memref<128xi32, #tpu.memory_space<smem>>) -> (i32, i32) {
    %c0_i32 = arith.constant 0 : i32
    %c0_i32_0 = arith.constant 0 : i32
    %c0_i32_1 = arith.constant 0 : i32
    return %c0_i32, %c0_i32_0 : i32, i32
  }
  func.func @transform_3(%arg0: i32, %arg1: memref<128xi32, #tpu.memory_space<smem>>) -> (i32, i32) {
    %c0_i32 = arith.constant 0 : i32
    %c0_i32_0 = arith.constant 0 : i32
    %c0_i32_1 = arith.constant 0 : i32
    return %c0_i32, %c0_i32_0 : i32, i32
  }
  func.func @transform_4(%arg0: i32, %arg1: memref<128xi32, #tpu.memory_space<smem>>) -> (i32, i32) {
    %c0_i32 = arith.constant 0 : i32
    %c0_i32_0 = arith.constant 0 : i32
    %c0_i32_1 = arith.constant 0 : i32
    return %c0_i32, %c0_i32_0 : i32, i32
  }
}

</mosaic_0001>

<llo_original>
// kernel: tpu_custom_call.1
$region0: #{tpu_custom_call.1}
  #allocation0 [shape = 'u32[]', space=smem, size = 0x4, offset = 0x4, fixed_abs, tag = 'smem constant byte address 0x4 - core index']
  #allocation1 [shape = 'u32[72,128]{1,0:T(1,128)}', space=vmem, size = 0x9000, scoped, tag = 'internal scratch']
  #allocation2 [shape = 'f32[16,32]{1,0:T(8,128)}', space=vmem, size = 0x2000, scoped, tag = 'scratch operand']
  #allocation3 [shape = 'f32[16,32]{1,0:T(8,128)}', space=vmem, size = 0x2000, scoped, tag = 'scratch operand']
  #allocation4 [shape = 's32[1]{0}', space=sflag, size = 0x4, scoped, tag = 'scoped memory for tpu_custom_call.1']
  #allocation5 [shape = 'u8[512]{0}', space=smem, size = 0x200, scoped, tag = 'prefetched SMEM operand 0']
  %s0 = inlined_call_operand.hbm [shape: s32[128], index: 0, kind: input, shape index: {}]
  %s1 = inlined_call_operand.hbm [shape: f32[16,32], index: 1, kind: input, shape index: {}]
  %s2 = inlined_call_operand.hbm [shape: f32[32,32], index: 2, kind: input, shape index: {}]
  %s3 = inlined_call_operand.hbm [shape: f32[32,128], index: 3, kind: input, shape index: {}]
  %s4 = inlined_call_operand.hbm [shape: f32[16,16], index: 4, kind: input, shape index: {}]
  %s5 = inlined_call_operand.hbm [shape: f32[16,128], index: 5, kind: output, shape index: {}]
  %s6 = sld [smem:[#allocation0]]
  $region49: #{tpu_custom_call.1} parent=0
    _
  %s8 = ssub.s32 1, %s6
  %s9 = scalar_select 0, %s8, %s6
  %s11 = sshll.u32 %s0, 4
  %s12 = int_to_ptr.hbm [resolvable:$true] %s11
  %14 = dma.hbm_to_smem %s12, 16, [#allocation5], [#allocation4]
  %16 = dma.done [#allocation4], 16
  %17 = sfence
  $region1: #{tpu_custom_call.1} parent=0
    #allocation6 [shape = 'u8[8192]{0}', space=vmem, size = 0x2000, scoped, tag = 'input window, operand 1, single buffered']
    #allocation7 [shape = 's32[1]{0}', space=sflag, size = 0x4, scoped, tag = 'scoped memory for tpu_custom_call.1']
    #allocation8 [shape = 's32[1]{0}', space=sflag, size = 0x4, scoped, tag = 'scoped memory for tpu_custom_call.1']
    #allocation9 [shape = 'u8[16384]{0}', space=vmem, size = 0x4000, scoped, tag = 'input window, operand 2, single buffered']
    #allocation10 [shape = 's32[1]{0}', space=sflag, size = 0x4, scoped, tag = 'scoped memory for tpu_custom_call.1']
    #allocation11 [shape = 'u8[16384]{0}', space=vmem, size = 0x4000, scoped, tag = 'input window, operand 3, single buffered']
    #allocation12 [shape = 'u8[8192]{0}', space=vmem, size = 0x2000, scoped, tag = 'input window, operand 4, single buffered']
    #allocation13 [shape = 's32[1]{0}', space=sflag, size = 0x4, scoped, tag = 'scoped memory for tpu_custom_call.1']
    #allocation14 [shape = 'u8[8192]{0}', space=vmem, size = 0x2000, scoped, tag = 'output window, operand 0, single buffered']
    %18 = vsyncpa [#allocation7], 0
    %19 = vsyncpa [#allocation10], 0
    %20 = vsyncpa [#allocation13], 0
    %21 = vsyncpa [#allocation8], 0
    // Predicated region
    $region2: #{tpu_custom_call.1} parent=1 // pred_check
      _
    $region3: #{tpu_custom_call.1} parent=1 // pred_check_branch
      %23 = sbr.rel (0) target = $region5
    $region4: #{tpu_custom_call.1} parent=1 // pred_region
      %25 = vsyncadd [#allocation7], 0
      %s26 = sshll.u32 %s1, 4
      %s27 = int_to_ptr.hbm [resolvable:$true] %s26
      %s28 = sshll.u32 [#allocation6], 4
      %s29 = int_to_ptr.vmem [resolvable:$true] %s28
      %34 = dma.hbm_to_vmem [thread:$0]  %s27, 256, %s29, [#allocation7], 128, 128, 8
    $region5: #{tpu_custom_call.1} parent=1 // pred_fallthru
      _
    // Predicated region
    $region6: #{tpu_custom_call.1} parent=1 // pred_check
      _
    $region7: #{tpu_custom_call.1} parent=1 // pred_check_branch
      %36 = sbr.rel (0) target = $region9
    $region8: #{tpu_custom_call.1} parent=1 // pred_region
      %38 = vsyncadd [#allocation10], 0
      %s39 = sshll.u32 %s2, 4
      %s40 = int_to_ptr.hbm [resolvable:$true] %s39
      %s41 = sshll.u32 [#allocation9], 4
      %s42 = int_to_ptr.vmem [resolvable:$true] %s41
      %47 = dma.hbm_to_vmem [thread:$0]  %s40, 512, %s42, [#allocation10], 128, 128, 8
    $region9: #{tpu_custom_call.1} parent=1 // pred_fallthru
      _
    // Predicated region
    $region10: #{tpu_custom_call.1} parent=1 // pred_check
      _
    $region11: #{tpu_custom_call.1} parent=1 // pred_check_branch
      %49 = sbr.rel (0) target = $region13
    $region12: #{tpu_custom_call.1} parent=1 // pred_region
      %51 = vsyncadd [#allocation10], 0
      %s52 = sshll.u32 %s3, 4
      %s53 = int_to_ptr.hbm [resolvable:$true] %s52
      %s54 = sshll.u32 [#allocation11], 4
      %s55 = int_to_ptr.vmem [resolvable:$true] %s54
      %60 = dma.hbm_to_vmem [thread:$0]  %s53, 512, %s55, [#allocation10], 128, 128, 8
    $region13: #{tpu_custom_call.1} parent=1 // pred_fallthru
      _
    // Predicated region
    $region14: #{tpu_custom_call.1} parent=1 // pred_check
      _
    $region15: #{tpu_custom_call.1} parent=1 // pred_check_branch
      %62 = sbr.rel (0) target = $region17
    $region16: #{tpu_custom_call.1} parent=1 // pred_region
      %64 = vsyncadd [#allocation13], 0
      %s65 = sshll.u32 %s4, 4
      %s66 = int_to_ptr.hbm [resolvable:$true] %s65
      %s67 = sshll.u32 [#allocation12], 4
      %s68 = int_to_ptr.vmem [resolvable:$true] %s67
      %73 = dma.hbm_to_vmem [thread:$0]  %s66, 256, %s68, [#allocation13], 128, 128, 8
    $region17: #{tpu_custom_call.1} parent=1 // pred_fallthru
      _
    // Predicated region
    $region18: #{tpu_custom_call.1} parent=1 // pred_check
      _
    $region19: #{tpu_custom_call.1} parent=1 // pred_check_branch
      %75 = sbr.rel (0) target = $region21
    $region20: #{tpu_custom_call.1} parent=1 // pred_region
      %77 = dma.done [#allocation7], 256
    $region21: #{tpu_custom_call.1} parent=1 // pred_fallthru
      _
    // Predicated region
    $region22: #{tpu_custom_call.1} parent=1 // pred_check
      _
    $region23: #{tpu_custom_call.1} parent=1 // pred_check_branch
      %79 = sbr.rel (0) target = $region25
    $region24: #{tpu_custom_call.1} parent=1 // pred_region
      %81 = dma.done [#allocation10], 512
    $region25: #{tpu_custom_call.1} parent=1 // pred_fallthru
      _
    // Predicated region
    $region26: #{tpu_custom_call.1} parent=1 // pred_check
      _
    $region27: #{tpu_custom_call.1} parent=1 // pred_check_branch
      %83 = sbr.rel (0) target = $region29
    $region28: #{tpu_custom_call.1} parent=1 // pred_region
      %85 = dma.done [#allocation10], 512
    $region29: #{tpu_custom_call.1} parent=1 // pred_fallthru
      _
    // Predicated region
    $region30: #{tpu_custom_call.1} parent=1 // pred_check
      _
    $region31: #{tpu_custom_call.1} parent=1 // pred_check_branch
      %87 = sbr.rel (0) target = $region33
    $region32: #{tpu_custom_call.1} parent=1 // pred_region
      %89 = dma.done [#allocation13], 256
    $region33: #{tpu_custom_call.1} parent=1 // pred_fallthru
      _
    %v91 = vld [vmem:[#allocation12] sm:$0xff]
    %v92 = vld [vmem:[#allocation12 + $0x8] sm:$0xff]
    %v93 = vperm.slane %v91, 0
    %v94 = vmul.f32 %v91, %v93
    %v95 = vmul.f32 %v92, %v93
    %vm96 = vcmask 130048
    %v97 = vsel %vm96, %v94, 0.0
    %98 = vadd.xlane.f32.xlu0 %v97
    %v99 = vpop.xlane.xlu0 %98
    %v100 = vsel %vm96, %v95, 0.0
    %101 = vadd.xlane.f32.xlu0 %v100
    %v102 = vpop.xlane.xlu0 %101
    %v103 = vmul.f32 %v91, %v91
    %vm104 = vcmask 122880
    %v105 = vsel %vm104, %v103, 0.0
    %106 = vadd.xlane.f32.xlu0 %v105
    %v107 = vpop.xlane.xlu0 %106
    %v108 = vrot.slane %v107, 4
    %v109 = vadd.f32 %v107, %v108
    %v110 = vrot.slane %v109, 2
    %v111 = vadd.f32 %v109, %v110
    %v112 = vrot.slane %v111, 1
    %v113 = vadd.f32 %v111, %v112
    %s114 = vtos %v113
    %v115 = vstv %s114
    %v116 = vrsqrt.pop %v115
    %v117 = vmul.f32 %v116, %v115
    %v118 = vmul.f32 %v117, %v116
    %v119 = vmul.f32 0.5, %v118
    %v120 = vsub.f32 1.5, %v119
    %v121 = vmul.f32 %v116, %v120
    %v122 = vmul.f32 %v115, %v121
    %vm123 = vcmp.eq.f32.partialorder %v115, inf
    %v124 = vsel %vm123, %v115, %v122
    %vm125 = vcmp.eq.f32.partialorder %v115, 0.0
    %v126 = vand.u32 %v115, 2147483648
    %v127 = vsel %vm125, %v126, %v124
    %s128 = vtos %v127
    %v129 = vmul.f32 %v92, %v92
    %v130 = vsel %vm96, %v103, 0.0
    %131 = vadd.xlane.f32.xlu0 %v130
    %v132 = vpop.xlane.xlu0 %131
    %v133 = vsel %vm96, %v129, 0.0
    %134 = vadd.xlane.f32.xlu0 %v133
    %v135 = vpop.xlane.xlu0 %134
    %v136 = vrsqrt.pop %v132
    %v137 = vmul.f32 %v136, %v132
    %v138 = vmul.f32 %v137, %v136
    %v139 = vmul.f32 0.5, %v138
    %v140 = vsub.f32 1.5, %v139
    %v141 = vmul.f32 %v136, %v140
    %v142 = vmul.f32 %v132, %v141
    %vm143 = vcmp.eq.f32.partialorder %v132, inf
    %v144 = vsel %vm143, %v132, %v142
    %vm145 = vcmp.eq.f32.partialorder %v132, 0.0
    %v146 = vand.u32 %v132, 2147483648
    %v147 = vsel %vm145, %v146, %v144
    %v148 = vrsqrt.pop %v135
    %v149 = vmul.f32 %v148, %v135
    %v150 = vmul.f32 %v149, %v148
    %v151 = vmul.f32 0.5, %v150
    %v152 = vsub.f32 1.5, %v151
    %v153 = vmul.f32 %v148, %v152
    %v154 = vmul.f32 %v135, %v153
    %vm155 = vcmp.eq.f32.partialorder %v135, inf
    %v156 = vsel %vm155, %v135, %v154
    %vm157 = vcmp.eq.f32.partialorder %v135, 0.0
    %v158 = vand.u32 %v135, 2147483648
    %v159 = vsel %vm157, %v158, %v156
    %v160 = vstv %s128
    %v161 = vmul.f32 %v160, %v147
    %v162 = vmul.f32 %v160, %v159
    %v163 = vrcp.pop %v161
    %v164 = vmul.f32 %v161, %v163
    %v165 = vsub.f32 1.0, %v164
    %v166 = vmul.f32 %v163, %v165
    %v167 = vadd.f32 %v163, %v166
    %vm168 = vweird.f32 %v161
    %vm169 = vweird.f32 %v163
    %vm170 = vmor %vm168, %vm169
    %v171 = vsel %vm170, %v163, %v167
    %v172 = vand.u32 2147483647, %v161
    %vm173 = vcmp.eq.f32.partialorder %v172, 8.507059e+37
    %v174 = vand.u32 %v161, 2147483648
    %v175 = vor.u32 1.1754944e-38, %v174
    %v176 = vsel %vm173, %v175, %v171
    %v177 = vmul.f32 %v99, %v176
    %v178 = vrcp.pop %v162
    %v179 = vmul.f32 %v162, %v178
    %v180 = vsub.f32 1.0, %v179
    %v181 = vmul.f32 %v178, %v180
    %v182 = vadd.f32 %v178, %v181
    %vm183 = vweird.f32 %v162
    %vm184 = vweird.f32 %v178
    %vm185 = vmor %vm183, %vm184
    %v186 = vsel %vm185, %v178, %v182
    %v187 = vand.u32 2147483647, %v162
    %vm188 = vcmp.eq.f32.partialorder %v187, 8.507059e+37
    %v189 = vand.u32 %v162, 2147483648
    %v190 = vor.u32 1.1754944e-38, %v189
    %v191 = vsel %vm188, %v190, %v186
    %v192 = vmul.f32 %v102, %v191
    %vm193 = vcmask 7168
    %v194 = vsel %vm193, %v177, 0.0
    %v195 = vsel %vm193, %v192, 0.0
    %v196 = vadd.f32 %v194, %v195
    %197 = vadd.xlane.f32.xlu0 %v196
    %v198 = vpop.xlane.xlu0 %197
    %v199 = vrot.slane %v198, 4
    %v200 = vadd.f32 %v198, %v199
    %v201 = vrot.slane %v200, 2
    %v202 = vadd.f32 %v200, %v201
    %v203 = vrot.slane %v202, 1
    %v204 = vadd.f32 %v202, %v203
    %s205 = vtos %v204
    %v206 = vrcp.pop 16.0
    %v207 = vmul.f32 16.0, %v206
    %v208 = vsub.f32 1.0, %v207
    %v209 = vmul.f32 %v206, %v208
    %v210 = vadd.f32 %v206, %v209
    %vm211 = vweird.f32 %v206
    %v212 = vsel %vm211, %v206, %v210
    %s213 = vtos %v212
    %s214 = smul.f32 %s205, %s213
    %v215 = vld [vmem:[#allocation9] sm:$0xff]
    %v216 = vld [vmem:[#allocation9 + $0x8] sm:$0xff]
    %v217 = vld [vmem:[#allocation9 + $0x10] sm:$0xff]
    %v218 = vld [vmem:[#allocation9 + $0x18] sm:$0xff]
    %v219 = vstv %s214
    %v220 = vmul.f32 %v215, %v219
    %v221 = vmul.f32 %v216, %v219
    %v222 = vmul.f32 %v217, %v219
    %v223 = vmul.f32 %v218, %v219
    %v224 = vpack.c.bf16 %v221, %v220
    %v225 = vpack.c.bf16 %v223, %v222
    %v226 = vld [vmem:[#allocation6] sm:$0xff]
    %v227 = vld [vmem:[#allocation6 + $0x8] sm:$0xff]
    %v228 = vpack.c.bf16 %v227, %v226
    %vm229 = vcmask 261120
    %v231 = vsel %vm229, %v228, 0
    %233 = vmatpush.bf16.msra.mxu0 0
    %234 = vmatpush.bf16.msra.mxu0 0
    %235 = vmatpush.bf16.msra.mxu0 0
    %236 = vmatpush.bf16.msra.mxu0 0
    %237 = vmatpush.bf16.msra.mxu0 0
    %238 = vmatpush.bf16.msra.mxu0 0
    %239 = vmatpush.bf16.msra.mxu0 %v225
    %240 = vmatpush.bf16.msra.mxu0 %v224
    %241 = vmatmul.bf16.gmra.mxu0 %v231
    %v242 = vpop.f32.mrf.mxu0
    %v243 = vadd.f32 0.0, %v242
    %v244 = vpop.f32.mrf.mxu0
    %v245 = vadd.f32 0.0, %v244
    %246 = vdwg.mxu0
    %247 = vst.msk [vmem:[#allocation2] sm:$0xff] %vm229, %v243
    %248 = vst.msk [vmem:[#allocation2 + $0x8] sm:$0xff] %vm229, %v245
    loop: start=0, step=1, limit=16
    $region34: #{tpu_custom_call.1} parent=1 // loop_pre_header
      _
    $region35: #{tpu_custom_call.1} parent=1 // loop_header
      %s250 = sphi 0, %s254
      %p251 = scmp.ge.s32.totalorder %s250, 16
    $region36: #{tpu_custom_call.1} parent=1 // loop_header_branch
      %253 = sbr.rel (%p251) target = $region40
    $region37: #{tpu_custom_call.1} parent=1 // loop_body
      %s255 = smul.u32 %s250, 8
      %s256 = sld [smem:[#allocation5 + %s255]]
      %s257 = sadd.s32 %s255, 1
      %s258 = sld [smem:[#allocation5 + %s257]]
      %s259 = sadd.s32 %s255, 2
      %s260 = sld [smem:[#allocation5 + %s259]]
      %s261 = sadd.s32 %s255, 3
      %s262 = sld [smem:[#allocation5 + %s261]]
      %s263 = sadd.s32 %s255, 4
      %s264 = sld [smem:[#allocation5 + %s263]]
      %s265 = sadd.s32 %s255, 5
      %s266 = sld [smem:[#allocation5 + %s265]]
      %s267 = sadd.s32 %s255, 6
      %s268 = sld [smem:[#allocation5 + %s267]]
      %s269 = sadd.s32 %s255, 7
      %s270 = sld [smem:[#allocation5 + %s269]]
      %p271 = scmp.gt.s32.totalorder %s256, 0
      %s272 = scalar_select %p271, 1, 0
      %s273 = scvt.s32.f32 %s272
      %s274 = sadd.f32 %s273, 0.0
      %p275 = scmp.gt.s32.totalorder %s258, 0
      %s276 = scalar_select %p275, 1, 0
      %s277 = scvt.s32.f32 %s276
      %s278 = sadd.f32 %s274, %s277
      %p279 = scmp.gt.s32.totalorder %s260, 0
      %s280 = scalar_select %p279, 1, 0
      %s281 = scvt.s32.f32 %s280
      %s282 = sadd.f32 %s278, %s281
      %p283 = scmp.gt.s32.totalorder %s262, 0
      %s284 = scalar_select %p283, 1, 0
      %s285 = scvt.s32.f32 %s284
      %s286 = sadd.f32 %s282, %s285
      %p287 = scmp.gt.s32.totalorder %s264, 0
      %s288 = scalar_select %p287, 1, 0
      %s289 = scvt.s32.f32 %s288
      %s290 = sadd.f32 %s286, %s289
      %p291 = scmp.gt.s32.totalorder %s266, 0
      %s292 = scalar_select %p291, 1, 0
      %s293 = scvt.s32.f32 %s292
      %s294 = sadd.f32 %s290, %s293
      %p295 = scmp.gt.s32.totalorder %s268, 0
      %s296 = scalar_select %p295, 1, 0
      %s297 = scvt.s32.f32 %s296
      %s298 = sadd.f32 %s294, %s297
      %p299 = scmp.gt.s32.totalorder %s270, 0
      %s300 = scalar_select %p299, 1, 0
      %s301 = scvt.s32.f32 %s300
      %s302 = sadd.f32 %s298, %s301
      %p303 = scmp.gt.f32.partialorder %s302, 0.0
      %s304 = smax.f32 %s302, 1.0
      %v305 = vstv %s304
      %v306 = vrcp.pop %v305
      %v307 = vmul.f32 %v305, %v306
      %v308 = vsub.f32 1.0, %v307
      %v309 = vmul.f32 %v306, %v308
      %v310 = vadd.f32 %v306, %v309
      %vm311 = vweird.f32 %v305
      %vm312 = vweird.f32 %v306
      %vm313 = vmor %vm311, %vm312
      %v314 = vsel %vm313, %v306, %v310
      %v315 = vand.u32 2147483647, %v305
      %vm316 = vcmp.eq.f32.partialorder %v315, 8.507059e+37
      %v317 = vand.u32 %v305, 2147483648
      %v318 = vor.u32 1.1754944e-38, %v317
      %v319 = vsel %vm316, %v318, %v314
      %s320 = vtos %v319
      %s321 = scalar_select %p303, %s320, 0.125
      %s322 = scalar_select %p303, %s273, 1.0
      %s323 = smul.f32 %s322, %s321
      %p324 = scmp.gt.s32.totalorder %s256, 0
      %s325 = scalar_select %p324, %s256, 0
      %p326 = scmp.lt.s32.totalorder %s325, 15
      %s327 = scalar_select %p326, %s325, 15
      %s328 = scalar_lea.vmem [#allocation2], %s327
      %v329 = vld [vmem:[%s328] sm:$0x1]
      %v330 = vstv %s323
      %v331 = vmul.f32 %v330, %v329
      %v332 = vadd.f32 %v331, 0.0
      %s333 = scalar_select %p303, %s277, 1.0
      %s334 = smul.f32 %s333, %s321
      %p335 = scmp.gt.s32.totalorder %s258, 0
      %s336 = scalar_select %p335, %s258, 0
      %p337 = scmp.lt.s32.totalorder %s336, 15
      %s338 = scalar_select %p337, %s336, 15
      %s339 = scalar_lea.vmem [#allocation2], %s338
      %v340 = vld [vmem:[%s339] sm:$0x1]
      %v341 = vstv %s334
      %v342 = vmul.f32 %v341, %v340
      %v343 = vadd.f32 %v332, %v342
      %s344 = scalar_select %p303, %s281, 1.0
      %s345 = smul.f32 %s344, %s321
      %p346 = scmp.gt.s32.totalorder %s260, 0
      %s347 = scalar_select %p346, %s260, 0
      %p348 = scmp.lt.s32.totalorder %s347, 15
      %s349 = scalar_select %p348, %s347, 15
      %s350 = scalar_lea.vmem [#allocation2], %s349
      %v351 = vld [vmem:[%s350] sm:$0x1]
      %v352 = vstv %s345
      %v353 = vmul.f32 %v352, %v351
      %v354 = vadd.f32 %v343, %v353
      %s355 = scalar_select %p303, %s285, 1.0
      %s356 = smul.f32 %s355, %s321
      %p357 = scmp.gt.s32.totalorder %s262, 0
      %s358 = scalar_select %p357, %s262, 0
      %p359 = scmp.lt.s32.totalorder %s358, 15
      %s360 = scalar_select %p359, %s358, 15
      %s361 = scalar_lea.vmem [#allocation2], %s360
      %v362 = vld [vmem:[%s361] sm:$0x1]
      %v363 = vstv %s356
      %v364 = vmul.f32 %v363, %v362
      %v365 = vadd.f32 %v354, %v364
      %s366 = scalar_select %p303, %s289, 1.0
      %s367 = smul.f32 %s366, %s321
      %p368 = scmp.gt.s32.totalorder %s264, 0
      %s369 = scalar_select %p368, %s264, 0
      %p370 = scmp.lt.s32.totalorder %s369, 15
      %s371 = scalar_select %p370, %s369, 15
      %s372 = scalar_lea.vmem [#allocation2], %s371
      %v373 = vld [vmem:[%s372] sm:$0x1]
      %v374 = vstv %s367
      %v375 = vmul.f32 %v374, %v373
      %v376 = vadd.f32 %v365, %v375
      %s377 = scalar_select %p303, %s293, 1.0
      %s378 = smul.f32 %s377, %s321
      %p379 = scmp.gt.s32.totalorder %s266, 0
      %s380 = scalar_select %p379, %s266, 0
      %p381 = scmp.lt.s32.totalorder %s380, 15
      %s382 = scalar_select %p381, %s380, 15
      %s383 = scalar_lea.vmem [#allocation2], %s382
      %v384 = vld [vmem:[%s383] sm:$0x1]
      %v385 = vstv %s378
      %v386 = vmul.f32 %v385, %v384
      %v387 = vadd.f32 %v376, %v386
      %s388 = scalar_select %p303, %s297, 1.0
      %s389 = smul.f32 %s388, %s321
      %p390 = scmp.gt.s32.totalorder %s268, 0
      %s391 = scalar_select %p390, %s268, 0
      %p392 = scmp.lt.s32.totalorder %s391, 15
      %s393 = scalar_select %p392, %s391, 15
      %s394 = scalar_lea.vmem [#allocation2], %s393
      %v395 = vld [vmem:[%s394] sm:$0x1]
      %v396 = vstv %s389
      %v397 = vmul.f32 %v396, %v395
      %v398 = vadd.f32 %v387, %v397
      %s399 = scalar_select %p303, %s301, 1.0
      %s400 = smul.f32 %s399, %s321
      %p401 = scmp.gt.s32.totalorder %s270, 0
      %s402 = scalar_select %p401, %s270, 0
      %p403 = scmp.lt.s32.totalorder %s402, 15
      %s404 = scalar_select %p403, %s402, 15
      %s405 = scalar_lea.vmem [#allocation2], %s404
      %v406 = vld [vmem:[%s405] sm:$0x1]
      %v407 = vstv %s400
      %v408 = vmul.f32 %v407, %v406
      %v409 = vadd.f32 %v398, %v408
      %v410 = vmax.f32 %v409, 0.0
      %s411 = scalar_lea.vmem [#allocation3], %s250
      %vm412 = vcmask 253952
      %413 = vst.msk [vmem:[%s411] sm:$0x1] %vm412, %v410
    $region38: #{tpu_custom_call.1} parent=1 // loop_footer
      %s254 = sadd.s32 1, %s250
    $region39: #{tpu_custom_call.1} parent=1 // loop_footer_branch
      %249 = sbr.rel target = $region35
    $region40: #{tpu_custom_call.1} parent=1 // loop_exit
      _
    %v414 = vld [vmem:[#allocation3] sm:$0xff]
    %v415 = vld [vmem:[#allocation3 + $0x8] sm:$0xff]
    %v416 = vpack.c.bf16 %v415, %v414
    %v417 = vld [vmem:[#allocation11] sm:$0xff]
    %v418 = vld [vmem:[#allocation11 + $0x8] sm:$0xff]
    %v419 = vld [vmem:[#allocation11 + $0x10] sm:$0xff]
    %v420 = vld [vmem:[#allocation11 + $0x18] sm:$0xff]
    %v421 = vpack.c.bf16 %v418, %v417
    %v422 = vpack.c.bf16 %v420, %v419
    %v424 = vsel %vm229, %v416, 0
    %426 = vmatpush.bf16.msra.mxu0 0
    %427 = vmatpush.bf16.msra.mxu0 0
    %428 = vmatpush.bf16.msra.mxu0 0
    %429 = vmatpush.bf16.msra.mxu0 0
    %430 = vmatpush.bf16.msra.mxu0 0
    %431 = vmatpush.bf16.msra.mxu0 0
    %432 = vmatpush.bf16.msra.mxu0 %v422
    %433 = vmatpush.bf16.msra.mxu0 %v421
    %434 = vmatmul.bf16.gmra.mxu0 %v424
    %v435 = vpop.f32.mrf.mxu0
    %v436 = vadd.f32 0.0, %v435
    %v437 = vpop.f32.mrf.mxu0
    %v438 = vadd.f32 0.0, %v437
    %439 = vdwg.mxu0
    %440 = vst [vmem:[#allocation14] sm:$0xff] %v436
    %441 = vst [vmem:[#allocation14 + $0x8] sm:$0xff] %v438
    // Predicated region
    $region41: #{tpu_custom_call.1} parent=1 // pred_check
      _
    $region42: #{tpu_custom_call.1} parent=1 // pred_check_branch
      %443 = sbr.rel (0) target = $region44
    $region43: #{tpu_custom_call.1} parent=1 // pred_region
      %445 = vsyncadd [#allocation8], 0
      %s446 = sshll.u32 [#allocation14], 4
      %s447 = int_to_ptr.vmem [resolvable:$true] %s446
      %s448 = sshll.u32 %s5, 4
      %s449 = int_to_ptr.hbm [resolvable:$true] %s448
      %454 = dma.vmem_to_hbm [thread:$0]  %s447, 256, %s449, [#allocation8], 128, 128, 8
    $region44: #{tpu_custom_call.1} parent=1 // pred_fallthru
      _
    // Predicated region
    $region45: #{tpu_custom_call.1} parent=1 // pred_check
      _
    $region46: #{tpu_custom_call.1} parent=1 // pred_check_branch
      %456 = sbr.rel (0) target = $region48
    $region47: #{tpu_custom_call.1} parent=1 // pred_region
      %458 = dma.done [#allocation8], 256
    $region48: #{tpu_custom_call.1} parent=1 // pred_fallthru
      _
    %459 = vsyncpa [#allocation7], 1
    %460 = vsyncpa [#allocation10], 1
    %461 = vsyncpa [#allocation13], 1
    %462 = vsyncpa [#allocation8], 1

</llo_original>
